<compile_context>
chip_gen: v5e
topology: v5e:2x2
jax: 0.10.0
libtpu: 0.0.40
codegen_flags: <defaults>
</compile_context>

<pallas_src>
import functools

import jax
import jax.numpy as jnp
from jax.experimental import pallas as pl
from jax.experimental.pallas import tpu as pltpu

EPS = 1e-6

_TE_MAX = 128 * 1024            # max edges per tile (lane axis)
_VMEM_BLOCK_BUDGET = 24 << 20   # bytes for double-buffered blocks
_VMEM_LIMIT = 32 << 20          # scoped VMEM limit (fits v5e/v6e/v7x)


def _round_up(x, m):
    return ((x + m - 1) // m) * m


# ----------------------------------------------------------------------------
# Pallas kernel: per-edge hyperboloid distance -> tanh(-dist)
# ----------------------------------------------------------------------------
def tanh_decoder_kernel(zz_ref, o_ref, *, d, radius):
    """zz_ref: [rows_pad, te]  (rows 0:d = src feats, d:2d = dst feats,
    edges on lanes).  o_ref: [1, te] lane-dense scores."""
    zz = zz_ref[...]
    zs = zz[0:d, :]                                       # [d, te]  static slices
    zd = zz[d:2 * d, :]                                   # [d, te]

    prod = zs * zd                                        # single multiply, reused
    # -<x,y>_L = x0*y0 - sum_{i>0} x_i*y_i
    neg_lorentz = prod[0:1, :] - jnp.sum(prod[1:, :], axis=0, keepdims=True)

    inv_r2 = 1.0 / (radius * radius)                      # static Python constant
    alpha = jnp.maximum(neg_lorentz * inv_r2, 1.0 + EPS)
    root = jnp.sqrt((alpha - 1.0) * (alpha + 1.0))

    if radius == 1.0:
        # tanh(arccosh(a)) == sqrt(a^2 - 1) / a  -> skip log and tanh entirely.
        o_ref[...] = -(root / alpha)
    else:
        dist = radius * jnp.log(alpha + root)             # arccosh via log
        o_ref[...] = -jnp.tanh(dist)


# ----------------------------------------------------------------------------
# Wrapper: TanhDecoder.forward
# ----------------------------------------------------------------------------
def tanh_decoder_forward(z, edge_index, radius, *, te=None):
    """z: [N, D] float32 hyperboloid points, edge_index: int [2, E]."""
    z = z.astype(jnp.float32)
    N, D = z.shape
    E = edge_index.shape[1]
    if E == 0:                                            # empty-edge guard
        return jnp.zeros((0,), jnp.float32)

    rows = 2 * D
    rows_pad = _round_up(rows, 8)

    if te is None:
        # double-buffered input + double-buffered output bytes per lane column
        per_lane_bytes = 4 * 2 * (rows_pad + 1)
        te_fit = (_VMEM_BLOCK_BUDGET // per_lane_bytes) // 128 * 128
        te = max(128, min(_TE_MAX, te_fit, _round_up(E, 128)))
    e_pad = _round_up(E, te)

    src = edge_index[0].astype(jnp.int32)
    dst = edge_index[1].astype(jnp.int32)
    if e_pad != E:
        pad = e_pad - E
        src = jnp.concatenate([src, jnp.zeros((pad,), jnp.int32)])
        dst = jnp.concatenate([dst, jnp.zeros((pad,), jnp.int32)])

    # Gather columns of z.T so the transposed [D, E_pad] layout is produced
    # directly (no [E_pad, D] intermediate + relayout); pack src/dst features
    # into one slab so there is a single input DMA stream per grid step.
    z_t = z.T                                             # [D, N]  (tiny)
    z_src_t = jnp.take(z_t, src, axis=1)                  # [D, E_pad]
    z_dst_t = jnp.take(z_t, dst, axis=1)                  # [D, E_pad]
    pieces = [z_src_t, z_dst_t]
    if rows_pad != rows:
        pieces.append(jnp.zeros((rows_pad - rows, e_pad), jnp.float32))
    packed = jnp.concatenate(pieces, axis=0)              # [rows_pad, E_pad]

    grid = (e_pad // te,)
    out = pl.pallas_call(
        functools.partial(tanh_decoder_kernel, d=D, radius=float(radius)),
        grid=grid,
        in_specs=[pl.BlockSpec((rows_pad, te), lambda i: (0, i))],
        out_specs=pl.BlockSpec((1, te), lambda i: (0, i)),
        out_shape=jax.ShapeDtypeStruct((1, e_pad), jnp.float32),
        compiler_params=pltpu.CompilerParams(
            dimension_semantics=("parallel",),
            vmem_limit_bytes=_VMEM_LIMIT),
    )(packed)

    return out[0, :E]                                     # .squeeze()


# ----------------------------------------------------------------------------
# Pure-JAX reference (for correctness check)
# ----------------------------------------------------------------------------
def tanh_decoder_reference(z, edge_index, radius):
    zs = jnp.take(z, edge_index[0], axis=0)
    zd = jnp.take(z, edge_index[1], axis=0)
    lorentz = -zs[:, 0] * zd[:, 0] + jnp.sum(zs[:, 1:] * zd[:, 1:], axis=1)
    alpha = jnp.maximum(-lorentz / (radius * radius), 1.0 + EPS)
    dist = radius * jnp.arccosh(alpha)
    return jnp.tanh(-dist)


# ----------------------------------------------------------------------------
if __name__ == "__main__":
    z_dim = 3          # points live in R^{z_dim+1} on the hyperboloid
    N = 8              # nodes

    key = jax.random.PRNGKey(0)
    k_sp, k_e1, k_e2 = jax.random.split(key, 3)

    def make_points(radius):
        spatial = 0.5 * jax.random.normal(k_sp, (N, z_dim), jnp.float32)
        x0 = jnp.sqrt(radius * radius +
                      jnp.sum(spatial * spatial, axis=1, keepdims=True))
        return jnp.concatenate([x0, spatial], axis=1)     # [N, z_dim + 1]

    # ---- Case 1: radius == 1 fast path, single tile --------------------------
    radius = 1.0
    z = make_points(radius)
    E = 16
    edge_index = jax.random.randint(k_e1, (2, E), 0, N, dtype=jnp.int32)

    scores = jax.block_until_ready(tanh_decoder_forward(z, edge_index, radius))
    ref = tanh_decoder_reference(z, edge_index, radius)

    assert scores.shape == (E,)
    assert bool(jnp.all(jnp.isfinite(scores)))
    # tanh(-dist) with dist >= 0  =>  scores in [-1, 0]
    assert bool(jnp.all((scores >= -1.0) & (scores <= 0.0)))
    assert bool(jnp.allclose(scores, ref, atol=1e-5, rtol=1e-5))

    # ---- Case 2: general radius path, forced small tile -> multi-step grid ---
    radius2 = 2.0
    z2 = make_points(radius2)
    E2 = 300
    edge_index2 = jax.random.randint(k_e2, (2, E2), 0, N, dtype=jnp.int32)

    scores2 = jax.block_until_ready(
        tanh_decoder_forward(z2, edge_index2, radius2, te=128))
    ref2 = tanh_decoder_reference(z2, edge_index2, radius2)

    assert scores2.shape == (E2,)
    assert bool(jnp.all(jnp.isfinite(scores2)))
    assert bool(jnp.allclose(scores2, ref2, atol=1e-5, rtol=1e-5))

    print("KERNEL_OK")
</pallas_src>

<mosaic_0001>
module attributes {stable_mosaic.version = 11 : i64} {
  func.func @tanh_decoder_kernel(%arg0: i32, %arg1: memref<8x128xf32, #tpu.memory_space<vmem>>, %arg2: memref<1x128xf32, #tpu.memory_space<vmem>>) attributes {dimension_semantics = [#tpu.dimension_semantics<parallel>], iteration_bounds = array<i64: 1>, scalar_prefetch = 0 : i64, scratch_operands = 0 : i64, tpu.core_type = #tpu.core_type<tc>, window_params = [{transform_indices = @transform_0, window_bounds = array<i64: 8, 128>}, {transform_indices = @transform_1, window_bounds = array<i64: 1, 128>}]} {
    %c0 = arith.constant 0 : index
    %c0_0 = arith.constant 0 : index
    %0 = vector.load %arg1[%c0, %c0_0] : memref<8x128xf32, #tpu.memory_space<vmem>>, vector<8x128xf32>
    %1 = vector.extract_strided_slice %0 {offsets = [0, 0], sizes = [4, 128], strides = [1, 1]} : vector<8x128xf32> to vector<4x128xf32>
    %2 = vector.extract_strided_slice %0 {offsets = [4, 0], sizes = [4, 128], strides = [1, 1]} : vector<8x128xf32> to vector<4x128xf32>
    %3 = arith.mulf %1, %2 : vector<4x128xf32>
    %4 = vector.extract_strided_slice %3 {offsets = [0, 0], sizes = [1, 128], strides = [1, 1]} : vector<4x128xf32> to vector<1x128xf32>
    %5 = vector.extract_strided_slice %3 {offsets = [1, 0], sizes = [3, 128], strides = [1, 1]} : vector<4x128xf32> to vector<3x128xf32>
    %cst = arith.constant dense<0.000000e+00> : vector<128xf32>
    %6 = vector.multi_reduction <add>, %5, %cst [0] : vector<3x128xf32> to vector<128xf32>
    %7 = vector.shape_cast %6 : vector<128xf32> to vector<1x128xf32>
    %8 = arith.subf %4, %7 : vector<1x128xf32>
    %cst_1 = arith.constant 1.000000e+00 : f32
    %9 = vector.broadcast %cst_1 : f32 to vector<1x128xf32>
    %10 = arith.mulf %8, %9 : vector<1x128xf32>
    %cst_2 = arith.constant 1.00000095 : f32
    %11 = vector.broadcast %cst_2 : f32 to vector<1x128xf32>
    %12 = arith.maximumf %10, %11 : vector<1x128xf32>
    %cst_3 = arith.constant 1.000000e+00 : f32
    %13 = vector.broadcast %cst_3 : f32 to vector<1x128xf32>
    %14 = arith.subf %12, %13 : vector<1x128xf32>
    %cst_4 = arith.constant 1.000000e+00 : f32
    %15 = vector.broadcast %cst_4 : f32 to vector<1x128xf32>
    %16 = arith.addf %12, %15 : vector<1x128xf32>
    %17 = arith.mulf %14, %16 : vector<1x128xf32>
    %18 = math.sqrt %17 : vector<1x128xf32>
    %19 = arith.divf %18, %12 : vector<1x128xf32>
    %cst_5 = arith.constant 0.000000e+00 : f32
    %20 = vector.broadcast %cst_5 : f32 to vector<1x128xf32>
    %21 = arith.subf %20, %19 : vector<1x128xf32>
    %c0_6 = arith.constant 0 : index
    %c0_7 = arith.constant 0 : index
    %22 = vector.load %arg2[%c0_6, %c0_7] : memref<1x128xf32, #tpu.memory_space<vmem>>, vector<1x128xf32>
    tpu.vector_store %arg2[%c0_6, %c0_7], %21 {strides = array<i32>} : memref<1x128xf32, #tpu.memory_space<vmem>>, vector<1x128xf32>,
    return
  }
  func.func @transform_0(%arg0: i32) -> (i32, i32) {
    %c0_i32 = arith.constant 0 : i32
    %c0_i32_0 = arith.constant 0 : i32
    return %c0_i32, %arg0 : i32, i32
  }
  func.func @transform_1(%arg0: i32) -> (i32, i32) {
    %c0_i32 = arith.constant 0 : i32
    %c0_i32_0 = arith.constant 0 : i32
    return %c0_i32, %arg0 : i32, i32
  }
}

</mosaic_0001>

<llo_original>
// kernel: tpu_custom_call.1
$region0: #{tpu_custom_call.1}
  #allocation0 [shape = 'u32[]', space=smem, size = 0x4, offset = 0x4, fixed_abs, tag = 'smem constant byte address 0x4 - core index']
  #allocation1 [shape = 'u32[72,128]{1,0:T(1,128)}', space=vmem, size = 0x9000, scoped, tag = 'internal scratch']
  %s0 = inlined_call_operand.hbm [shape: f32[8,128], index: 0, kind: input, shape index: {}]
  %s1 = inlined_call_operand.hbm [shape: f32[1,128], index: 1, kind: output, shape index: {}]
  %s2 = sld [smem:[#allocation0]]
  $region18: #{tpu_custom_call.1} parent=0
    _
  %s4 = ssub.s32 1, %s2
  %s5 = scalar_select 0, %s4, %s2
  $region1: #{tpu_custom_call.1} parent=0
    #allocation2 [shape = 'u8[4096]{0}', space=vmem, size = 0x1000, scoped, tag = 'input window, operand 0, single buffered']
    #allocation3 [shape = 's32[1]{0}', space=sflag, size = 0x4, scoped, tag = 'scoped memory for tpu_custom_call.1']
    #allocation4 [shape = 's32[1]{0}', space=sflag, size = 0x4, scoped, tag = 'scoped memory for tpu_custom_call.1']
    #allocation5 [shape = 'u8[512]{0}', space=vmem, size = 0x400, scoped, tag = 'output window, operand 0, single buffered']
    %6 = vsyncpa [#allocation3], 0
    %7 = vsyncpa [#allocation4], 0
    // Predicated region
    $region2: #{tpu_custom_call.1} parent=1 // pred_check
      _
    $region3: #{tpu_custom_call.1} parent=1 // pred_check_branch
      %9 = sbr.rel (0) target = $region5
    $region4: #{tpu_custom_call.1} parent=1 // pred_region
      %11 = vsyncadd [#allocation3], 0
      %s13 = sshll.u32 %s0, 4
      %s14 = int_to_ptr.hbm [resolvable:$true] %s13
      %s15 = sshll.u32 [#allocation2], 4
      %s16 = int_to_ptr.vmem [resolvable:$true] %s15
      %18 = dma.hbm_to_vmem [thread:$0]  %s14, 128, %s16, [#allocation3]
    $region5: #{tpu_custom_call.1} parent=1 // pred_fallthru
      _
    // Predicated region
    $region6: #{tpu_custom_call.1} parent=1 // pred_check
      _
    $region7: #{tpu_custom_call.1} parent=1 // pred_check_branch
      %20 = sbr.rel (0) target = $region9
    $region8: #{tpu_custom_call.1} parent=1 // pred_region
      %22 = dma.done [#allocation3], 128
    $region9: #{tpu_custom_call.1} parent=1 // pred_fallthru
      _
    %v23 = vld [vmem:[#allocation2] sm:$0xff]
    %v25 = vrot.slane %v23, 4
    %v27 = vmul.f32 %v23, %v25
    %v29 = vrot.slane %v27, 1
    %vm31 = vcmask 1042432
    %v32 = vsel %vm31, %v29, 0.0
    %v33 = vrot.slane %v32, 4
    %v34 = vadd.f32 %v32, %v33
    %v35 = vrot.slane %v34, 2
    %v36 = vadd.f32 %v34, %v35
    %v37 = vrot.slane %v36, 1
    %v38 = vadd.f32 %v36, %v37
    %v39 = vsub.f32 %v27, %v38
    %v40 = vmax.f32 %v39, 1.000001
    %v41 = vsub.f32 %v40, 1.0
    %v42 = vadd.f32 %v40, 1.0
    %v43 = vmul.f32 %v41, %v42
    %v44 = vrsqrt.pop %v43
    %v45 = vmul.f32 %v44, %v43
    %v46 = vmul.f32 %v45, %v44
    %v47 = vmul.f32 0.5, %v46
    %v48 = vsub.f32 1.5, %v47
    %v49 = vmul.f32 %v44, %v48
    %v50 = vmul.f32 %v43, %v49
    %vm51 = vcmp.eq.f32.partialorder %v43, inf
    %v52 = vsel %vm51, %v43, %v50
    %vm53 = vcmp.eq.f32.partialorder %v43, 0.0
    %v54 = vand.u32 %v43, 2147483648
    %v55 = vsel %vm53, %v54, %v52
    %v56 = vrcp.pop %v40
    %v57 = vmul.f32 %v40, %v56
    %v58 = vsub.f32 1.0, %v57
    %v59 = vmul.f32 %v56, %v58
    %v60 = vadd.f32 %v56, %v59
    %vm61 = vweird.f32 %v40
    %vm62 = vweird.f32 %v56
    %vm63 = vmor %vm61, %vm62
    %v64 = vsel %vm63, %v56, %v60
    %v65 = vand.u32 2147483647, %v40
    %vm66 = vcmp.eq.f32.partialorder %v65, 8.507059e+37
    %v67 = vand.u32 %v40, 2147483648
    %v68 = vor.u32 1.1754944e-38, %v67
    %v69 = vsel %vm66, %v68, %v64
    %v70 = vmul.f32 %v55, %v69
    %v71 = vsub.f32 0.0, %v70
    %72 = vst [vmem:[#allocation5] sm:$0x1] %v71
    // Predicated region
    $region10: #{tpu_custom_call.1} parent=1 // pred_check
      _
    $region11: #{tpu_custom_call.1} parent=1 // pred_check_branch
      %74 = sbr.rel (0) target = $region13
    $region12: #{tpu_custom_call.1} parent=1 // pred_region
      %76 = vsyncadd [#allocation4], 0
      %s78 = sshll.u32 [#allocation5], 4
      %s79 = int_to_ptr.vmem [resolvable:$true] %s78
      %s80 = sshll.u32 %s1, 4
      %s81 = int_to_ptr.hbm [resolvable:$true] %s80
      %83 = dma.vmem_to_hbm [thread:$0]  %s79, 16, %s81, [#allocation4]
    $region13: #{tpu_custom_call.1} parent=1 // pred_fallthru
      _
    // Predicated region
    $region14: #{tpu_custom_call.1} parent=1 // pred_check
      _
    $region15: #{tpu_custom_call.1} parent=1 // pred_check_branch
      %85 = sbr.rel (0) target = $region17
    $region16: #{tpu_custom_call.1} parent=1 // pred_region
      %87 = dma.done [#allocation4], 16
    $region17: #{tpu_custom_call.1} parent=1 // pred_fallthru
      _
    %88 = vsyncpa [#allocation3], 1
    %89 = vsyncpa [#allocation4], 1

</llo_original>
